<compile_context>
chip_gen: v7x
topology: tpu7x:2x2x1
jax: 0.10.0
libtpu: 0.0.40
codegen_flags: <defaults>
</compile_context>

<pallas_src>
import functools

import jax
import jax.numpy as jnp
from jax.experimental import pallas as pl
from jax.experimental.pallas import tpu as pltpu

# ---- model hyperparameters (small, consistent with the module) ----
N_HEADS = 2
EMBED_DIM = 32
D_K = 8
FFN_HIDDEN = 64
B = 2
SEQ = 8
LN_EPS = 1e-5

_INV_SQRT2 = 0.7071067811865476

# ---- single parameter-slab layout (rows; lane width = 128) ------------------
_LANES = 128
_VEC_ROWS = 16                      # 8 rows used; padded to 16 (bf16 tile align)
_R_WQKV = _VEC_ROWS                 # (EMBED_DIM, 3*H*Dk)     rows 16..47
_R_WFC = _R_WQKV + EMBED_DIM        # (H*Dk, EMBED_DIM)       rows 48..63
_R_W1 = _R_WFC + N_HEADS * D_K      # (EMBED_DIM, FFN_HIDDEN) rows 64..95
_R_W2 = _R_W1 + EMBED_DIM           # (FFN_HIDDEN, EMBED_DIM) rows 96..159
_SLAB_ROWS = _R_W2 + FFN_HIDDEN     # 160

# vec-section row indices
_ROW_LN1_G, _ROW_LN1_B, _ROW_LN2_G, _ROW_LN2_B = 0, 1, 2, 3
_ROW_B_FC, _ROW_B1, _ROW_B2, _ROW_B_QKV = 4, 5, 6, 7


def _layernorm(v, gamma_row, beta_row):
    mu = jnp.mean(v, axis=-1, keepdims=True)
    var = jnp.mean((v - mu) ** 2, axis=-1, keepdims=True)  # biased var (PyTorch LN)
    return (v - mu) * jax.lax.rsqrt(var + LN_EPS) * gamma_row + beta_row


def _gelu_exact(x):
    # nn.GELU() default is the exact erf-based GELU.
    return 0.5 * x * (1.0 + jax.lax.erf(x * _INV_SQRT2))


def transformer_block_kernel(x_ref, p_ref, o_ref, *, batch):
    E, H, Dk, F = EMBED_DIM, N_HEADS, D_K, FFN_HIDDEN
    x = x_ref[...].astype(jnp.float32)                 # (M, E), M = B*L
    M = x.shape[0]
    L = M // batch

    # -- unpack the single lane-dense parameter slab (all slices are static) --
    vec = p_ref[0:_VEC_ROWS, :].astype(jnp.float32)    # LN params & biases, f32 math
    ln1_g = vec[_ROW_LN1_G:_ROW_LN1_G + 1, :E]
    ln1_b = vec[_ROW_LN1_B:_ROW_LN1_B + 1, :E]
    ln2_g = vec[_ROW_LN2_G:_ROW_LN2_G + 1, :E]
    ln2_b = vec[_ROW_LN2_B:_ROW_LN2_B + 1, :E]
    b_fc = vec[_ROW_B_FC:_ROW_B_FC + 1, :E]
    b1 = vec[_ROW_B1:_ROW_B1 + 1, :F]
    b2 = vec[_ROW_B2:_ROW_B2 + 1, :E]
    b_qkv = vec[_ROW_B_QKV:_ROW_B_QKV + 1, :3 * H * Dk]

    w_qkv = p_ref[_R_WQKV:_R_WQKV + E, :3 * H * Dk]    # (E, 3*H*Dk), Q cols pre-scaled
    w_fc = p_ref[_R_WFC:_R_WFC + H * Dk, :E]           # (H*Dk, E)
    w1 = p_ref[_R_W1:_R_W1 + E, :F]                    # (E, F)
    w2 = p_ref[_R_W2:_R_W2 + F, :E]                    # (F, E)

    def mm(a, w):        # weight matmul in the slab dtype, f32 accumulation
        return jnp.dot(a.astype(w.dtype), w, preferred_element_type=jnp.float32)

    # -------- Sublayer 1: PreNorm + MultiHeadAttention + residual ------------
    xn = _layernorm(x, ln1_g, ln1_b)
    qkv = mm(xn, w_qkv) + b_qkv                        # (M, 3*H*Dk): one fused MXU pass

    head_outs = []
    for h in range(H):   # unrolled at trace time; head chains are independent
        q = qkv[:, h * Dk:(h + 1) * Dk].reshape(batch, L, Dk)
        k = qkv[:, (H + h) * Dk:(H + h + 1) * Dk].reshape(batch, L, Dk)
        v = qkv[:, (2 * H + h) * Dk:(2 * H + h + 1) * Dk].reshape(batch, L, Dk)
        # 1/sqrt(Dk) already folded into the Q weight/bias.
        s = jnp.einsum('bld,bmd->blm', q, k, preferred_element_type=jnp.float32)
        s = s - jnp.max(s, axis=-1, keepdims=True)
        p = jnp.exp(s)
        p = p / jnp.sum(p, axis=-1, keepdims=True)      # exact normalization
        o3 = jnp.einsum('blm,bmd->bld', p, v, preferred_element_type=jnp.float32)
        head_outs.append(o3.reshape(M, Dk))

    attn = jnp.concatenate(head_outs, axis=-1)          # (M, H*Dk) lane concat
    x1 = x + mm(attn, w_fc) + b_fc                      # residual (dropout = identity)

    # -------- Sublayer 2: PreNorm + FFN + residual ----------------------------
    x1n = _layernorm(x1, ln2_g, ln2_b)
    hid = _gelu_exact(mm(x1n, w1) + b1)
    ffn = mm(hid, w2) + b2
    o_ref[...] = (x1 + ffn).astype(o_ref.dtype)


def prepare_kernel_params(p, weights_dtype=jnp.float32):
    """Repack PyTorch-layout params into one lane-dense (160, 128) slab.

    weights_dtype=jnp.bfloat16 stores the slab in bf16 (recommended on v6e/v7x:
    halves weight DMA bytes, MXU-native); the kernel still accumulates matmuls
    in f32 and keeps all elementwise math in f32.
    """
    E, H, Dk, F = EMBED_DIM, N_HEADS, D_K, FFN_HIDDEN
    inv_scale = 1.0 / (Dk ** 0.5)

    # PyTorch packed column order: c = h*(3*Dk) + kind*Dk + d  (kind 0=q,1=k,2=v).
    w = jnp.asarray(p['w_qkv'], jnp.float32).reshape(E, H, 3, Dk)
    b = jnp.asarray(p['b_qkv'], jnp.float32).reshape(H, 3, Dk)
    # Kernel column order: c = kind*(H*Dk) + h*Dk + d  (Q block | K block | V block).
    scale = jnp.array([inv_scale, 1.0, 1.0], jnp.float32)   # fold 1/sqrt(Dk) into Q
    w_fused = (jnp.transpose(w, (0, 2, 1, 3)) * scale.reshape(1, 3, 1, 1)
               ).reshape(E, 3 * H * Dk)
    b_fused = (jnp.transpose(b, (1, 0, 2)) * scale.reshape(3, 1, 1)).reshape(3 * H * Dk)

    def pad_cols(a):
        a = jnp.asarray(a, jnp.float32)
        return jnp.pad(a, ((0, 0), (0, _LANES - a.shape[1])))

    vec = jnp.zeros((_VEC_ROWS, _LANES), jnp.float32)
    for row_idx, row_val in (
            (_ROW_LN1_G, p['ln1_g']), (_ROW_LN1_B, p['ln1_b']),
            (_ROW_LN2_G, p['ln2_g']), (_ROW_LN2_B, p['ln2_b']),
            (_ROW_B_FC, p['b_fc']), (_ROW_B1, p['b1']), (_ROW_B2, p['b2']),
            (_ROW_B_QKV, b_fused)):
        row_val = jnp.asarray(row_val, jnp.float32).reshape(-1)
        vec = vec.at[row_idx, :row_val.shape[0]].set(row_val)

    slab = jnp.concatenate(
        [vec, pad_cols(w_fused), pad_cols(p['w_fc']),
         pad_cols(p['w1']), pad_cols(p['w2'])], axis=0)
    assert slab.shape == (_SLAB_ROWS, _LANES)
    return slab.astype(weights_dtype)


def transformer_block(x, param_slab):
    """x: (B, L, E) float32; param_slab: output of prepare_kernel_params.

    Dropout layers of the reference module are identity (eval semantics).
    """
    Bn, L, E = x.shape
    H, Dk, F = N_HEADS, D_K, FFN_HIDDEN
    M = Bn * L
    x2d = x.reshape(M, E)

    flops = (2 * M * E * (3 * H * Dk)          # fused QKV projection
             + 2 * M * (H * Dk) * E            # output projection
             + 2 * M * E * F + 2 * M * F * E   # FFN
             + 2 * 2 * Bn * H * L * L * Dk)    # attention scores + PV
    transcendentals = M * F + Bn * H * L * L + 2 * M
    bytes_accessed = (x2d.size * x2d.dtype.itemsize
                      + param_slab.size * param_slab.dtype.itemsize
                      + M * E * x2d.dtype.itemsize)

    # No grid at this size (M = 16): one invocation, everything VMEM-resident.
    # Scaling note: for large M, tile x/out over a "parallel" grid axis on M
    # (weights keep a constant index_map) so v7x's 2nd TensorCore gets work and
    # the working set stays under the scoped VMEM limit.
    out2d = pl.pallas_call(
        functools.partial(transformer_block_kernel, batch=Bn),
        out_shape=jax.ShapeDtypeStruct((M, E), x.dtype),
        in_specs=[pl.BlockSpec(memory_space=pltpu.MemorySpace.VMEM),
                  pl.BlockSpec(memory_space=pltpu.MemorySpace.VMEM)],
        out_specs=pl.BlockSpec(memory_space=pltpu.MemorySpace.VMEM),
        cost_estimate=pl.CostEstimate(
            flops=int(flops),
            transcendentals=int(transcendentals),
            bytes_accessed=int(bytes_accessed)),
    )(x2d, param_slab)
    return out2d.reshape(Bn, L, E)


def init_params(key):
    """Deterministic PyTorch-layout parameter init (weights as [in, out])."""
    keys = jax.random.split(key, 6)
    E, H, Dk, F = EMBED_DIM, N_HEADS, D_K, FFN_HIDDEN

    def lin(k, fan_in, fan_out):
        kw, kb = jax.random.split(k)
        bound = 1.0 / (fan_in ** 0.5)
        wgt = jax.random.uniform(kw, (fan_in, fan_out), jnp.float32, -bound, bound)
        bias = jax.random.uniform(kb, (fan_out,), jnp.float32, -bound, bound)
        return wgt, bias

    w_qkv, b_qkv = lin(keys[0], E, 3 * H * Dk)
    w_fc, b_fc = lin(keys[1], H * Dk, E)
    w1, b1 = lin(keys[2], E, F)
    w2, b2 = lin(keys[3], F, E)
    # PyTorch inits LN to gamma=1, beta=0; perturb slightly so the numeric
    # cross-check exercises the packed LN-parameter path.
    ln1_g = 1.0 + 0.1 * jax.random.normal(keys[4], (E,), jnp.float32)
    ln1_b = 0.1 * jax.random.normal(keys[5], (E,), jnp.float32)
    ln2_g = 1.0 - 0.1 * jax.random.normal(keys[4], (E,), jnp.float32)
    ln2_b = -0.1 * jax.random.normal(keys[5], (E,), jnp.float32)

    return dict(ln1_g=ln1_g, ln1_b=ln1_b, w_qkv=w_qkv, b_qkv=b_qkv,
                w_fc=w_fc, b_fc=b_fc, ln2_g=ln2_g, ln2_b=ln2_b,
                w1=w1, b1=b1, w2=w2, b2=b2)


def reference_block(x, p):
    """Pure-JAX reference with PyTorch packing/semantics (eval mode, f32 HIGHEST)."""
    E, H, Dk = EMBED_DIM, N_HEADS, D_K
    hi = jax.lax.Precision.HIGHEST

    def ln(v, g, b):
        mu = jnp.mean(v, axis=-1, keepdims=True)
        var = jnp.mean((v - mu) ** 2, axis=-1, keepdims=True)
        return (v - mu) / jnp.sqrt(var + LN_EPS) * g + b

    Bn, L, _ = x.shape
    xn = ln(x, p['ln1_g'], p['ln1_b'])
    qkv = jnp.dot(xn, p['w_qkv'], precision=hi) + p['b_qkv']
    qkv = qkv.reshape(Bn, L, H, 3 * Dk)            # 'b l (h ddd)' -> head-major blocks
    q, k, v = qkv[..., :Dk], qkv[..., Dk:2 * Dk], qkv[..., 2 * Dk:]
    attn = jnp.einsum('blhd,bmhd->bhlm', q, k, precision=hi) / (Dk ** 0.5)
    w = jax.nn.softmax(attn, axis=-1)
    o = jnp.einsum('bhlm,bmhd->blhd', w, v, precision=hi).reshape(Bn, L, H * Dk)
    proj = jnp.dot(o, p['w_fc'], precision=hi) + p['b_fc']
    x1 = x + proj
    x1n = ln(x1, p['ln2_g'], p['ln2_b'])
    hid = jax.nn.gelu(jnp.dot(x1n, p['w1'], precision=hi) + p['b1'], approximate=False)
    ffn = jnp.dot(hid, p['w2'], precision=hi) + p['b2']
    return x1 + ffn


if __name__ == "__main__":
    key = jax.random.PRNGKey(0)
    kx, kp = jax.random.split(key)
    x = jax.random.normal(kx, (B, SEQ, EMBED_DIM), jnp.float32)
    params = init_params(kp)
    ref = reference_block(x, params)

    # f32 slab: tight numerical parity with the PyTorch-semantics reference.
    out = transformer_block(x, prepare_kernel_params(params, jnp.float32))
    out = jax.block_until_ready(out)
    assert out.shape == (B, SEQ, EMBED_DIM)
    assert jnp.all(jnp.isfinite(out))
    err_f32 = float(jnp.max(jnp.abs(out - ref)))
    assert err_f32 < 1e-3, f"f32 max abs error vs reference: {err_f32}"

    # bf16 weight slab (v6e/v7x recommendation): bf16 x bf16 -> f32 matmuls,
    # f32 elementwise math.  Precision contract: <= 5e-2 abs error vs f32 ref.
    out_bf16 = transformer_block(x, prepare_kernel_params(params, jnp.bfloat16))
    out_bf16 = jax.block_until_ready(out_bf16)
    assert jnp.all(jnp.isfinite(out_bf16))
    err_bf16 = float(jnp.max(jnp.abs(out_bf16 - ref)))
    assert err_bf16 < 5e-2, f"bf16-weight max abs error vs reference: {err_bf16}"

    print("KERNEL_OK")
</pallas_src>

<mosaic_0001>
module attributes {stable_mosaic.version = 11 : i64} {
  func.func @transformer_block_kernel(%arg0: memref<16x32xf32, #tpu.memory_space<vmem>>, %arg1: memref<160x128xf32, #tpu.memory_space<vmem>>, %arg2: memref<16x32xf32, #tpu.memory_space<vmem>>) attributes {dimension_semantics = [], scalar_prefetch = 0 : i64, scratch_operands = 0 : i64, tpu.core_type = #tpu.core_type<tc>} {
    %c0 = arith.constant 0 : index
    %c0_0 = arith.constant 0 : index
    %0 = vector.load %arg0[%c0, %c0_0] : memref<16x32xf32, #tpu.memory_space<vmem>>, vector<16x32xf32>
    %c0_1 = arith.constant 0 : index
    %c0_2 = arith.constant 0 : index
    %1 = vector.load %arg1[%c0_1, %c0_2] : memref<160x128xf32, #tpu.memory_space<vmem>>, vector<16x128xf32>
    %2 = vector.extract_strided_slice %1 {offsets = [0, 0], sizes = [1, 32], strides = [1, 1]} : vector<16x128xf32> to vector<1x32xf32>
    %3 = vector.extract_strided_slice %1 {offsets = [1, 0], sizes = [1, 32], strides = [1, 1]} : vector<16x128xf32> to vector<1x32xf32>
    %4 = vector.extract_strided_slice %1 {offsets = [2, 0], sizes = [1, 32], strides = [1, 1]} : vector<16x128xf32> to vector<1x32xf32>
    %5 = vector.extract_strided_slice %1 {offsets = [3, 0], sizes = [1, 32], strides = [1, 1]} : vector<16x128xf32> to vector<1x32xf32>
    %6 = vector.extract_strided_slice %1 {offsets = [4, 0], sizes = [1, 32], strides = [1, 1]} : vector<16x128xf32> to vector<1x32xf32>
    %7 = vector.extract_strided_slice %1 {offsets = [5, 0], sizes = [1, 64], strides = [1, 1]} : vector<16x128xf32> to vector<1x64xf32>
    %8 = vector.extract_strided_slice %1 {offsets = [6, 0], sizes = [1, 32], strides = [1, 1]} : vector<16x128xf32> to vector<1x32xf32>
    %9 = vector.extract_strided_slice %1 {offsets = [7, 0], sizes = [1, 48], strides = [1, 1]} : vector<16x128xf32> to vector<1x48xf32>
    %c16 = arith.constant 16 : index
    %c0_3 = arith.constant 0 : index
    %10 = vector.load %arg1[%c16, %c0_3] : memref<160x128xf32, #tpu.memory_space<vmem>>, vector<32x48xf32>
    %c48 = arith.constant 48 : index
    %c0_4 = arith.constant 0 : index
    %11 = vector.load %arg1[%c48, %c0_4] : memref<160x128xf32, #tpu.memory_space<vmem>>, vector<16x32xf32>
    %c64 = arith.constant 64 : index
    %c0_5 = arith.constant 0 : index
    %12 = vector.load %arg1[%c64, %c0_5] : memref<160x128xf32, #tpu.memory_space<vmem>>, vector<32x64xf32>
    %c96 = arith.constant 96 : index
    %c0_6 = arith.constant 0 : index
    %13 = vector.load %arg1[%c96, %c0_6] : memref<160x128xf32, #tpu.memory_space<vmem>>, vector<64x32xf32>
    %cst = arith.constant dense<0.000000e+00> : vector<16xf32>
    %14 = vector.multi_reduction <add>, %0, %cst [1] : vector<16x32xf32> to vector<16xf32>
    %15 = vector.shape_cast %14 : vector<16xf32> to vector<16x1xf32>
    %cst_7 = arith.constant 3.200000e+01 : f32
    %16 = vector.broadcast %cst_7 : f32 to vector<16x1xf32>
    %17 = arith.divf %15, %16 : vector<16x1xf32>
    %18 = vector.broadcast %17 : vector<16x1xf32> to vector<16x32xf32>
    %19 = arith.subf %0, %18 : vector<16x32xf32>
    %20 = arith.mulf %19, %19 : vector<16x32xf32>
    %cst_8 = arith.constant dense<0.000000e+00> : vector<16xf32>
    %21 = vector.multi_reduction <add>, %20, %cst_8 [1] : vector<16x32xf32> to vector<16xf32>
    %22 = vector.shape_cast %21 : vector<16xf32> to vector<16x1xf32>
    %cst_9 = arith.constant 3.200000e+01 : f32
    %23 = vector.broadcast %cst_9 : f32 to vector<16x1xf32>
    %24 = arith.divf %22, %23 : vector<16x1xf32>
    %25 = vector.broadcast %17 : vector<16x1xf32> to vector<16x32xf32>
    %26 = arith.subf %0, %25 : vector<16x32xf32>
    %cst_10 = arith.constant 9.99999974E-6 : f32
    %27 = vector.broadcast %cst_10 : f32 to vector<16x1xf32>
    %28 = arith.addf %24, %27 : vector<16x1xf32>
    %29 = math.rsqrt %28 : vector<16x1xf32>
    %30 = vector.broadcast %29 : vector<16x1xf32> to vector<16x32xf32>
    %31 = arith.mulf %26, %30 : vector<16x32xf32>
    %32 = vector.broadcast %2 : vector<1x32xf32> to vector<16x32xf32>
    %33 = arith.mulf %31, %32 : vector<16x32xf32>
    %34 = vector.broadcast %3 : vector<1x32xf32> to vector<16x32xf32>
    %35 = arith.addf %33, %34 : vector<16x32xf32>
    %cst_11 = arith.constant dense<0.000000e+00> : vector<16x48xf32>
    %36 = tpu.matmul %35, %10, %cst_11 {dimension_numbers = #tpu.dot_dimension_numbers<[1], [0], [0], [1], [0, 0, 1, 1], [], []>} : vector<16x32xf32>, vector<32x48xf32>, vector<16x48xf32> -> vector<16x48xf32>
    %37 = vector.broadcast %9 : vector<1x48xf32> to vector<16x48xf32>
    %38 = arith.addf %36, %37 : vector<16x48xf32>
    %39 = vector.extract_strided_slice %38 {offsets = [0, 0], sizes = [16, 8], strides = [1, 1]} : vector<16x48xf32> to vector<16x8xf32>
    %40 = vector.shape_cast %39 : vector<16x8xf32> to vector<2x8x8xf32>
    %41 = vector.extract_strided_slice %38 {offsets = [0, 16], sizes = [16, 8], strides = [1, 1]} : vector<16x48xf32> to vector<16x8xf32>
    %42 = vector.shape_cast %41 : vector<16x8xf32> to vector<2x8x8xf32>
    %43 = vector.extract_strided_slice %38 {offsets = [0, 32], sizes = [16, 8], strides = [1, 1]} : vector<16x48xf32> to vector<16x8xf32>
    %44 = vector.shape_cast %43 : vector<16x8xf32> to vector<2x8x8xf32>
    "tpu.trace_start"() <{level = 10 : i32, message = "bld,bmd->blm"}> : () -> ()
    %cst_12 = arith.constant dense<0.000000e+00> : vector<2x8x8xf32>
    %45 = tpu.matmul %40, %42, %cst_12 {dimension_numbers = #tpu.dot_dimension_numbers<[2], [2], [1], [1], [0, 0, 0, 1, 1, 1], [0], [0]>} : vector<2x8x8xf32>, vector<2x8x8xf32>, vector<2x8x8xf32> -> vector<2x8x8xf32>
    "tpu.trace_stop"() : () -> ()
    %cst_13 = arith.constant dense<0xFF800000> : vector<2x8xf32>
    %46 = vector.multi_reduction <maximumf>, %45, %cst_13 [2] : vector<2x8x8xf32> to vector<2x8xf32>
    %47 = vector.shape_cast %46 : vector<2x8xf32> to vector<2x8x1xf32>
    %48 = vector.broadcast %47 : vector<2x8x1xf32> to vector<2x8x8xf32>
    %49 = arith.subf %45, %48 : vector<2x8x8xf32>
    %50 = math.exp %49 : vector<2x8x8xf32>
    %cst_14 = arith.constant dense<0.000000e+00> : vector<2x8xf32>
    %51 = vector.multi_reduction <add>, %50, %cst_14 [2] : vector<2x8x8xf32> to vector<2x8xf32>
    %52 = vector.shape_cast %51 : vector<2x8xf32> to vector<2x8x1xf32>
    %53 = vector.broadcast %52 : vector<2x8x1xf32> to vector<2x8x8xf32>
    %54 = arith.divf %50, %53 : vector<2x8x8xf32>
    "tpu.trace_start"() <{level = 10 : i32, message = "blm,bmd->bld"}> : () -> ()
    %cst_15 = arith.constant dense<0.000000e+00> : vector<2x8x8xf32>
    %55 = tpu.matmul %54, %44, %cst_15 {dimension_numbers = #tpu.dot_dimension_numbers<[2], [1], [1], [2], [0, 0, 0, 1, 1, 2], [0], [0]>} : vector<2x8x8xf32>, vector<2x8x8xf32>, vector<2x8x8xf32> -> vector<2x8x8xf32>
    "tpu.trace_stop"() : () -> ()
    %56 = vector.shape_cast %55 : vector<2x8x8xf32> to vector<16x8xf32>
    %57 = vector.extract_strided_slice %38 {offsets = [0, 8], sizes = [16, 8], strides = [1, 1]} : vector<16x48xf32> to vector<16x8xf32>
    %58 = vector.shape_cast %57 : vector<16x8xf32> to vector<2x8x8xf32>
    %59 = vector.extract_strided_slice %38 {offsets = [0, 24], sizes = [16, 8], strides = [1, 1]} : vector<16x48xf32> to vector<16x8xf32>
    %60 = vector.shape_cast %59 : vector<16x8xf32> to vector<2x8x8xf32>
    %61 = vector.extract_strided_slice %38 {offsets = [0, 40], sizes = [16, 8], strides = [1, 1]} : vector<16x48xf32> to vector<16x8xf32>
    %62 = vector.shape_cast %61 : vector<16x8xf32> to vector<2x8x8xf32>
    "tpu.trace_start"() <{level = 10 : i32, message = "bld,bmd->blm"}> : () -> ()
    %cst_16 = arith.constant dense<0.000000e+00> : vector<2x8x8xf32>
    %63 = tpu.matmul %58, %60, %cst_16 {dimension_numbers = #tpu.dot_dimension_numbers<[2], [2], [1], [1], [0, 0, 0, 1, 1, 1], [0], [0]>} : vector<2x8x8xf32>, vector<2x8x8xf32>, vector<2x8x8xf32> -> vector<2x8x8xf32>
    "tpu.trace_stop"() : () -> ()
    %cst_17 = arith.constant dense<0xFF800000> : vector<2x8xf32>
    %64 = vector.multi_reduction <maximumf>, %63, %cst_17 [2] : vector<2x8x8xf32> to vector<2x8xf32>
    %65 = vector.shape_cast %64 : vector<2x8xf32> to vector<2x8x1xf32>
    %66 = vector.broadcast %65 : vector<2x8x1xf32> to vector<2x8x8xf32>
    %67 = arith.subf %63, %66 : vector<2x8x8xf32>
    %68 = math.exp %67 : vector<2x8x8xf32>
    %cst_18 = arith.constant dense<0.000000e+00> : vector<2x8xf32>
    %69 = vector.multi_reduction <add>, %68, %cst_18 [2] : vector<2x8x8xf32> to vector<2x8xf32>
    %70 = vector.shape_cast %69 : vector<2x8xf32> to vector<2x8x1xf32>
    %71 = vector.broadcast %70 : vector<2x8x1xf32> to vector<2x8x8xf32>
    %72 = arith.divf %68, %71 : vector<2x8x8xf32>
    "tpu.trace_start"() <{level = 10 : i32, message = "blm,bmd->bld"}> : () -> ()
    %cst_19 = arith.constant dense<0.000000e+00> : vector<2x8x8xf32>
    %73 = tpu.matmul %72, %62, %cst_19 {dimension_numbers = #tpu.dot_dimension_numbers<[2], [1], [1], [2], [0, 0, 0, 1, 1, 2], [0], [0]>} : vector<2x8x8xf32>, vector<2x8x8xf32>, vector<2x8x8xf32> -> vector<2x8x8xf32>
    "tpu.trace_stop"() : () -> ()
    %74 = vector.shape_cast %73 : vector<2x8x8xf32> to vector<16x8xf32>
    %75 = tpu.concatenate %56, %74 in 1 : vector<16x8xf32>, vector<16x8xf32> -> vector<16x16xf32>
    %cst_20 = arith.constant dense<0.000000e+00> : vector<16x32xf32>
    %76 = tpu.matmul %75, %11, %cst_20 {dimension_numbers = #tpu.dot_dimension_numbers<[1], [0], [0], [1], [0, 0, 1, 1], [], []>} : vector<16x16xf32>, vector<16x32xf32>, vector<16x32xf32> -> vector<16x32xf32>
    %77 = arith.addf %0, %76 : vector<16x32xf32>
    %78 = vector.broadcast %6 : vector<1x32xf32> to vector<16x32xf32>
    %79 = arith.addf %77, %78 : vector<16x32xf32>
    %cst_21 = arith.constant dense<0.000000e+00> : vector<16xf32>
    %80 = vector.multi_reduction <add>, %79, %cst_21 [1] : vector<16x32xf32> to vector<16xf32>
    %81 = vector.shape_cast %80 : vector<16xf32> to vector<16x1xf32>
    %cst_22 = arith.constant 3.200000e+01 : f32
    %82 = vector.broadcast %cst_22 : f32 to vector<16x1xf32>
    %83 = arith.divf %81, %82 : vector<16x1xf32>
    %84 = vector.broadcast %83 : vector<16x1xf32> to vector<16x32xf32>
    %85 = arith.subf %79, %84 : vector<16x32xf32>
    %86 = arith.mulf %85, %85 : vector<16x32xf32>
    %cst_23 = arith.constant dense<0.000000e+00> : vector<16xf32>
    %87 = vector.multi_reduction <add>, %86, %cst_23 [1] : vector<16x32xf32> to vector<16xf32>
    %88 = vector.shape_cast %87 : vector<16xf32> to vector<16x1xf32>
    %cst_24 = arith.constant 3.200000e+01 : f32
    %89 = vector.broadcast %cst_24 : f32 to vector<16x1xf32>
    %90 = arith.divf %88, %89 : vector<16x1xf32>
    %91 = vector.broadcast %83 : vector<16x1xf32> to vector<16x32xf32>
    %92 = arith.subf %79, %91 : vector<16x32xf32>
    %cst_25 = arith.constant 9.99999974E-6 : f32
    %93 = vector.broadcast %cst_25 : f32 to vector<16x1xf32>
    %94 = arith.addf %90, %93 : vector<16x1xf32>
    %95 = math.rsqrt %94 : vector<16x1xf32>
    %96 = vector.broadcast %95 : vector<16x1xf32> to vector<16x32xf32>
    %97 = arith.mulf %92, %96 : vector<16x32xf32>
    %98 = vector.broadcast %4 : vector<1x32xf32> to vector<16x32xf32>
    %99 = arith.mulf %97, %98 : vector<16x32xf32>
    %100 = vector.broadcast %5 : vector<1x32xf32> to vector<16x32xf32>
    %101 = arith.addf %99, %100 : vector<16x32xf32>
    %cst_26 = arith.constant dense<0.000000e+00> : vector<16x64xf32>
    %102 = tpu.matmul %101, %12, %cst_26 {dimension_numbers = #tpu.dot_dimension_numbers<[1], [0], [0], [1], [0, 0, 1, 1], [], []>} : vector<16x32xf32>, vector<32x64xf32>, vector<16x64xf32> -> vector<16x64xf32>
    %103 = vector.broadcast %7 : vector<1x64xf32> to vector<16x64xf32>
    %104 = arith.addf %102, %103 : vector<16x64xf32>
    %cst_27 = arith.constant 5.000000e-01 : f32
    %105 = vector.broadcast %cst_27 : f32 to vector<16x64xf32>
    %106 = arith.mulf %105, %104 : vector<16x64xf32>
    %cst_28 = arith.constant 0.707106769 : f32
    %107 = vector.broadcast %cst_28 : f32 to vector<16x64xf32>
    %108 = arith.mulf %104, %107 : vector<16x64xf32>
    %109 = math.erf %108 : vector<16x64xf32>
    %cst_29 = arith.constant 1.000000e+00 : f32
    %110 = vector.broadcast %cst_29 : f32 to vector<16x64xf32>
    %111 = arith.addf %110, %109 : vector<16x64xf32>
    %112 = arith.mulf %106, %111 : vector<16x64xf32>
    %cst_30 = arith.constant dense<0.000000e+00> : vector<16x32xf32>
    %113 = tpu.matmul %112, %13, %cst_30 {dimension_numbers = #tpu.dot_dimension_numbers<[1], [0], [0], [1], [0, 0, 1, 1], [], []>} : vector<16x64xf32>, vector<64x32xf32>, vector<16x32xf32> -> vector<16x32xf32>
    %114 = vector.broadcast %8 : vector<1x32xf32> to vector<16x32xf32>
    %115 = arith.addf %113, %114 : vector<16x32xf32>
    %116 = arith.addf %79, %115 : vector<16x32xf32>
    %c0_31 = arith.constant 0 : index
    %c0_32 = arith.constant 0 : index
    %117 = vector.load %arg2[%c0_31, %c0_32] : memref<16x32xf32, #tpu.memory_space<vmem>>, vector<16x32xf32>
    tpu.vector_store %arg2[%c0_31, %c0_32], %116 {strides = array<i32>} : memref<16x32xf32, #tpu.memory_space<vmem>>, vector<16x32xf32>,
    return
  }
}

</mosaic_0001>

<llo_original>
// kernel: tpu_custom_call.1
$region0: #{tpu_custom_call.1}
  #allocation0 [shape = 'u32[]', space=smem, size = 0x4, offset = 0x4, fixed_abs, tag = 'smem constant byte address 0x4 - core index']
  #allocation1 [shape = 'u32[144,128]{1,0:T(1,128)}', space=vmem, size = 0x12000, scoped, tag = 'internal scratch']
  %s0 = inlined_call_operand.hbm [shape: f32[16,32], index: 0, kind: input, shape index: {}]
  %s1 = inlined_call_operand.hbm [shape: f32[160,128], index: 1, kind: input, shape index: {}]
  %s2 = inlined_call_operand.hbm [shape: f32[16,32], index: 2, kind: output, shape index: {}]
  %s3 = sld [smem:[#allocation0]]
  $region26: #{tpu_custom_call.1} parent=0
    _
  %s5 = ssub.s32 1, %s3
  %s6 = scalar_select 0, %s5, %s3
  $region1: #{tpu_custom_call.1} parent=0
    #allocation2 [shape = 'u8[8192]{0}', space=vmem, size = 0x2000, scoped, tag = 'input window, operand 0, single buffered']
    #allocation3 [shape = 's32[1]{0}', space=sflag, size = 0x4, scoped, tag = 'scoped memory for tpu_custom_call.1']
    #allocation4 [shape = 's32[1]{0}', space=sflag, size = 0x4, scoped, tag = 'scoped memory for tpu_custom_call.1']
    #allocation5 [shape = 'u8[81920]{0}', space=vmem, size = 0x14000, scoped, tag = 'input window, operand 1, single buffered']
    #allocation6 [shape = 's32[1]{0}', space=sflag, size = 0x4, scoped, tag = 'scoped memory for tpu_custom_call.1']
    #allocation7 [shape = 'u8[8192]{0}', space=vmem, size = 0x2000, scoped, tag = 'output window, operand 0, single buffered']
    %7 = vsyncpa [#allocation3], 0
    %8 = vsyncpa [#allocation6], 0
    %9 = vsyncpa [#allocation4], 0
    // Predicated region
    $region2: #{tpu_custom_call.1} parent=1 // pred_check
      _
    $region3: #{tpu_custom_call.1} parent=1 // pred_check_branch
      %11 = sbr.rel (0) target = $region5
    $region4: #{tpu_custom_call.1} parent=1 // pred_region
      %s13 = ssub.s32 256, 256
      %14 = vsyncadd [#allocation3], %s13
      %s15 = sshll.u32 [#allocation2], 4
      %s16 = int_to_ptr.vmem [resolvable:$true] %s15
      %21 = dma.hbm_to_vmem [thread:$0]  %s0, 256, %s16, [#allocation3], 128, 128, 8
    $region5: #{tpu_custom_call.1} parent=1 // pred_fallthru
      _
    // Predicated region
    $region6: #{tpu_custom_call.1} parent=1 // pred_check
      _
    $region7: #{tpu_custom_call.1} parent=1 // pred_check_branch
      %23 = sbr.rel (0) target = $region9
    $region8: #{tpu_custom_call.1} parent=1 // pred_region
      %s25 = ssub.s32 2560, 2560
      %26 = vsyncadd [#allocation6], %s25
      %s27 = sshll.u32 [#allocation5], 4
      %s28 = int_to_ptr.vmem [resolvable:$true] %s27
      %33 = dma.hbm_to_vmem [thread:$0]  %s1, 2560, %s28, [#allocation6], 128, 128, 8
    $region9: #{tpu_custom_call.1} parent=1 // pred_fallthru
      _
    // Predicated region
    $region10: #{tpu_custom_call.1} parent=1 // pred_check
      _
    $region11: #{tpu_custom_call.1} parent=1 // pred_check_branch
      %35 = sbr.rel (0) target = $region13
    $region12: #{tpu_custom_call.1} parent=1 // pred_region
      %36 = dma.done [#allocation3], 256
    $region13: #{tpu_custom_call.1} parent=1 // pred_fallthru
      _
    // Predicated region
    $region14: #{tpu_custom_call.1} parent=1 // pred_check
      _
    $region15: #{tpu_custom_call.1} parent=1 // pred_check_branch
      %38 = sbr.rel (0) target = $region17
    $region16: #{tpu_custom_call.1} parent=1 // pred_region
      %39 = dma.done [#allocation6], 2560
    $region17: #{tpu_custom_call.1} parent=1 // pred_fallthru
      _
    %v40 = vld [vmem:[#allocation2] sm:$0xff]
    %v41 = vld [vmem:[#allocation2 + $0x8] sm:$0xff]
    %v42 = vld [vmem:[#allocation5] sm:$0xff]
    %v43 = vld [vmem:[#allocation5 + $0x10] sm:$0xff]
    %v44 = vld [vmem:[#allocation5 + $0x18] sm:$0xff]
    %v45 = vld [vmem:[#allocation5 + $0x20] sm:$0xff]
    %v46 = vld [vmem:[#allocation5 + $0x28] sm:$0xff]
    %v47 = vld [vmem:[#allocation5 + $0x30] sm:$0xff]
    %v48 = vld [vmem:[#allocation5 + $0x38] sm:$0xff]
    %v49 = vld [vmem:[#allocation5 + $0x40] sm:$0xff]
    %v50 = vld [vmem:[#allocation5 + $0x48] sm:$0xff]
    %v51 = vld [vmem:[#allocation5 + $0x50] sm:$0xff]
    %v52 = vld [vmem:[#allocation5 + $0x58] sm:$0xff]
    %v53 = vld [vmem:[#allocation5 + $0x60] sm:$0xff]
    %v54 = vld [vmem:[#allocation5 + $0x68] sm:$0xff]
    %v55 = vld [vmem:[#allocation5 + $0x70] sm:$0xff]
    %v56 = vld [vmem:[#allocation5 + $0x78] sm:$0xff]
    %v57 = vld [vmem:[#allocation5 + $0x80] sm:$0xff]
    %v58 = vld [vmem:[#allocation5 + $0x88] sm:$0xff]
    %v59 = vld [vmem:[#allocation5 + $0x90] sm:$0xff]
    %v60 = vld [vmem:[#allocation5 + $0x98] sm:$0xff]
    %vm61 = vcmask 261120
    %v62 = vsel %vm61, %v40, 0.0
    %63 = vadd.xlane.f32.xlu0 %v62
    %v64 = vpop.xlane.xlu0 %63
    %v65 = vsel %vm61, %v41, 0.0
    %66 = vadd.xlane.f32.xlu0 %v65
    %v67 = vpop.xlane.xlu0 %66
    %v68 = vrcp.pop 32.0
    %v69 = vmul.f32 %v64, %v68
    %v70 = vmul.f32 %v67, %v68
    %v71 = vsub.f32 %v40, %v69
    %v72 = vsub.f32 %v41, %v70
    %v73 = vmul.f32 %v71, %v71
    %v74 = vmul.f32 %v72, %v72
    %v75 = vsel %vm61, %v73, 0.0
    %76 = vadd.xlane.f32.xlu0 %v75
    %v77 = vpop.xlane.xlu0 %76
    %v78 = vsel %vm61, %v74, 0.0
    %79 = vadd.xlane.f32.xlu0 %v78
    %v80 = vpop.xlane.xlu0 %79
    %v81 = vmul.f32 %v77, %v68
    %v82 = vmul.f32 %v80, %v68
    %v83 = vadd.f32 %v81, 1e-05
    %v84 = vadd.f32 %v82, 1e-05
    %v85 = vrsqrt.pop %v83
    %v86 = vrsqrt.pop %v84
    %v87 = vmul.f32 %v71, %v85
    %v88 = vmul.f32 %v72, %v86
    %v89 = vlaneseq
    %v90 = vshrl.u32 %v89, 7
    %v91 = vsub.s32 0, %v90
    %v92 = vrot.slane %v42, %v91
    %v93 = vmul.f32 %v87, %v92
    %v94 = vmul.f32 %v88, %v92
    %v95 = vlaneseq
    %v96 = vshrl.u32 %v95, 7
    %v97 = vsub.s32 1, %v96
    %v98 = vrot.slane %v42, %v97
    %v99 = vadd.f32 %v93, %v98
    %v100 = vadd.f32 %v94, %v98
    %v101 = vlaneseq
    %v102 = vshrl.u32 %v101, 7
    %v103 = vsub.s32 7, %v102
    %v104 = vrot.slane %v42, %v103
    %v106 = vsel %vm61, %v99, 0
    %v109 = vsel %vm61, %v100, 0
    %111 = vmatprep.subr.mxu0 0.0
    %112 = vmatpush1.msra.mxu0 %v43
    %113 = vmatprep.subr.mxu0 0.0
    %114 = vmatpush1.msra.mxu0 %v44
    %115 = vmatprep.subr.mxu0 0.0
    %116 = vmatpush1.msra.mxu0 %v45
    %117 = vmatprep.subr.mxu0 0.0
    %118 = vmatpush1.msra.mxu0 %v46
    %119 = vmatprep.subr.mxu0 0.0
    %120 = vmatpush1.msra.mxu0 0.0
    %121 = vmatprep.subr.mxu0 0.0
    %122 = vmatpush1.msra.mxu0 0.0
    %123 = vmatprep.subr.mxu0 0.0
    %124 = vmatpush1.msra.mxu0 0.0
    %125 = vmatprep.subr.mxu0 0.0
    %126 = vmatpush1.msra.mxu0 0.0
    %127 = vmatprep.subr.mxu0 0.0
    %128 = vmatpush1.msra.mxu0 0.0
    %129 = vmatprep.subr.mxu0 0.0
    %130 = vmatpush1.msra.mxu0 0.0
    %131 = vmatprep.subr.mxu0 0.0
    %132 = vmatpush1.msra.mxu0 0.0
    %133 = vmatprep.subr.mxu0 0.0
    %134 = vmatpush1.msra.mxu0 0.0
    %135 = vmatprep.subr.mxu0 0.0
    %136 = vmatpush1.msra.mxu0 0.0
    %137 = vmatprep.subr.mxu0 0.0
    %138 = vmatpush1.msra.mxu0 0.0
    %139 = vmatprep.subr.mxu0 0.0
    %140 = vmatpush1.msra.mxu0 0.0
    %141 = vmatprep.subr.mxu0 0.0
    %142 = vmatpush1.msra.mxu0 0.0
    %143 = vmatprep.subr.mxu0 0.0
    %144 = vmatpush1.msra.mxu0 0.0
    %145 = vmatprep.subr.mxu0 0.0
    %146 = vmatpush1.msra.mxu0 0.0
    %147 = vmatprep.subr.mxu0 0.0
    %148 = vmatpush1.msra.mxu0 0.0
    %149 = vmatprep.subr.mxu0 0.0
    %150 = vmatpush1.msra.mxu0 0.0
    %151 = vmatprep.subr.mxu0 0.0
    %152 = vmatpush1.msra.mxu0 0.0
    %153 = vmatprep.subr.mxu0 0.0
    %154 = vmatpush1.msra.mxu0 0.0
    %155 = vmatprep.subr.mxu0 0.0
    %156 = vmatpush1.msra.mxu0 0.0
    %157 = vmatprep.subr.mxu0 0.0
    %158 = vmatpush1.msra.mxu0 0.0
    %159 = vmatprep.subr.mxu0 0.0
    %160 = vmatpush1.msra.mxu0 0.0
    %161 = vmatprep.subr.mxu0 0.0
    %162 = vmatpush1.msra.mxu0 0.0
    %163 = vmatprep.subr.mxu0 0.0
    %164 = vmatpush1.msra.mxu0 0.0
    %165 = vmatprep.subr.mxu0 0.0
    %166 = vmatpush1.msra.mxu0 0.0
    %167 = vmatprep.subr.mxu0 0.0
    %168 = vmatpush1.msra.mxu0 0.0
    %169 = vmatprep.subr.mxu0 0.0
    %170 = vmatpush1.msra.mxu0 0.0
    %171 = vmatprep.subr.mxu0 0.0
    %172 = vmatpush1.msra.mxu0 0.0
    %173 = vmatprep.subr.mxu0 0.0
    %174 = vmatpush1.msra.mxu0 0.0
    %175 = vmatprep.mubr.f32.mxu0 0.0
    %176 = vmatmul.mubr.f32.gmra.mrb[0].mxu0 %v106
    %v177 = vpop.f32.mrb[0].mxu0
    %v178 = vadd.f32 %v104, %v177
    %v179 = vpop.f32.mrb[0].mxu0
    %180 = vmatprep.mubr.f32.mxu0 0.0
    %181 = vmatmul.mubr.f32.gmra.mrb[0].mxu0 %v109
    %v182 = vpop.f32.mrb[0].mxu0
    %v183 = vadd.f32 %v104, %v182
    %v184 = vpop.f32.mrb[0].mxu0
    %185 = vdwg.mxu0
    %187 = vrot.lane.b32.xlu0 %v178, 112
    %v188 = vpop.permute.xlu0 %187
    %vm189 = vcmask 64512
    %v190 = vsel %vm189, %v178, 0
    %v192 = vsel %vm189, %v188, 0
    %194 = vmatprep.subr.mxu0 0.0
    %195 = vmatpush1.xpose.msra.mxu0 %v192
    %196 = vmatprep.subr.mxu0 0.0
    %197 = vmatpush1.xpose.msra.mxu0 0.0
    %198 = vmatprep.subr.mxu0 0.0
    %199 = vmatpush1.xpose.msra.mxu0 0.0
    %200 = vmatprep.subr.mxu0 0.0
    %201 = vmatpush1.xpose.msra.mxu0 0.0
    %202 = vmatprep.subr.mxu0 0.0
    %203 = vmatpush1.xpose.msra.mxu0 0.0
    %204 = vmatprep.subr.mxu0 0.0
    %205 = vmatpush1.xpose.msra.mxu0 0.0
    %206 = vmatprep.subr.mxu0 0.0
    %207 = vmatpush1.xpose.msra.mxu0 0.0
    %208 = vmatprep.subr.mxu0 0.0
    %209 = vmatpush1.xpose.msra.mxu0 0.0
    %210 = vmatprep.subr.mxu0 0.0
    %211 = vmatpush1.xpose.msra.mxu0 0.0
    %212 = vmatprep.subr.mxu0 0.0
    %213 = vmatpush1.xpose.msra.mxu0 0.0
    %214 = vmatprep.subr.mxu0 0.0
    %215 = vmatpush1.xpose.msra.mxu0 0.0
    %216 = vmatprep.subr.mxu0 0.0
    %217 = vmatpush1.xpose.msra.mxu0 0.0
    %218 = vmatprep.subr.mxu0 0.0
    %219 = vmatpush1.xpose.msra.mxu0 0.0
    %220 = vmatprep.subr.mxu0 0.0
    %221 = vmatpush1.xpose.msra.mxu0 0.0
    %222 = vmatprep.subr.mxu0 0.0
    %223 = vmatpush1.xpose.msra.mxu0 0.0
    %224 = vmatprep.subr.mxu0 0.0
    %225 = vmatpush1.xpose.msra.mxu0 0.0
    %226 = vmatprep.subr.mxu0 0.0
    %227 = vmatpush1.xpose.msra.mxu0 0.0
    %228 = vmatprep.subr.mxu0 0.0
    %229 = vmatpush1.xpose.msra.mxu0 0.0
    %230 = vmatprep.subr.mxu0 0.0
    %231 = vmatpush1.xpose.msra.mxu0 0.0
    %232 = vmatprep.subr.mxu0 0.0
    %233 = vmatpush1.xpose.msra.mxu0 0.0
    %234 = vmatprep.subr.mxu0 0.0
    %235 = vmatpush1.xpose.msra.mxu0 0.0
    %236 = vmatprep.subr.mxu0 0.0
    %237 = vmatpush1.xpose.msra.mxu0 0.0
    %238 = vmatprep.subr.mxu0 0.0
    %239 = vmatpush1.xpose.msra.mxu0 0.0
    %240 = vmatprep.subr.mxu0 0.0
    %241 = vmatpush1.xpose.msra.mxu0 0.0
    %242 = vmatprep.subr.mxu0 0.0
    %243 = vmatpush1.xpose.msra.mxu0 0.0
    %244 = vmatprep.subr.mxu0 0.0
    %245 = vmatpush1.xpose.msra.mxu0 0.0
    %246 = vmatprep.subr.mxu0 0.0
    %247 = vmatpush1.xpose.msra.mxu0 0.0
    %248 = vmatprep.subr.mxu0 0.0
    %249 = vmatpush1.xpose.msra.mxu0 0.0
    %250 = vmatprep.subr.mxu0 0.0
    %251 = vmatpush1.xpose.msra.mxu0 0.0
    %252 = vmatprep.subr.mxu0 0.0
    %253 = vmatpush1.xpose.msra.mxu0 0.0
    %254 = vmatprep.subr.mxu0 0.0
    %255 = vmatpush1.xpose.msra.mxu0 0.0
    %256 = vmatprep.subr.mxu0 0.0
    %257 = vmatpush1.xpose.msra.mxu0 0.0
    %258 = vmatprep.mubr.f32.mxu0 0.0
    %259 = vmatmul.mubr.f32.gmra.mrb[0].mxu0 %v190
    %v260 = vpop.f32.mrb[0].mxu0
    %v261 = vadd.f32 0.0, %v260
    %v262 = vpop.f32.mrb[0].mxu0
    %263 = vdwg.mxu0
    %265 = vrot.lane.b32.xlu0 %v183, 112
    %v266 = vpop.permute.xlu0 %265
    %v267 = vsel %vm189, %v183, 0
    %v269 = vsel %vm189, %v266, 0
    %271 = vmatprep.subr.mxu0 0.0
    %272 = vmatpush1.xpose.msra.mxu0 %v269
    %273 = vmatprep.subr.mxu0 0.0
    %274 = vmatpush1.xpose.msra.mxu0 0.0
    %275 = vmatprep.subr.mxu0 0.0
    %276 = vmatpush1.xpose.msra.mxu0 0.0
    %277 = vmatprep.subr.mxu0 0.0
    %278 = vmatpush1.xpose.msra.mxu0 0.0
    %279 = vmatprep.subr.mxu0 0.0
    %280 = vmatpush1.xpose.msra.mxu0 0.0
    %281 = vmatprep.subr.mxu0 0.0
    %282 = vmatpush1.xpose.msra.mxu0 0.0
    %283 = vmatprep.subr.mxu0 0.0
    %284 = vmatpush1.xpose.msra.mxu0 0.0
    %285 = vmatprep.subr.mxu0 0.0
    %286 = vmatpush1.xpose.msra.mxu0 0.0
    %287 = vmatprep.subr.mxu0 0.0
    %288 = vmatpush1.xpose.msra.mxu0 0.0
    %289 = vmatprep.subr.mxu0 0.0
    %290 = vmatpush1.xpose.msra.mxu0 0.0
    %291 = vmatprep.subr.mxu0 0.0
    %292 = vmatpush1.xpose.msra.mxu0 0.0
    %293 = vmatprep.subr.mxu0 0.0
    %294 = vmatpush1.xpose.msra.mxu0 0.0
    %295 = vmatprep.subr.mxu0 0.0
    %296 = vmatpush1.xpose.msra.mxu0 0.0
    %297 = vmatprep.subr.mxu0 0.0
    %298 = vmatpush1.xpose.msra.mxu0 0.0
    %299 = vmatprep.subr.mxu0 0.0
    %300 = vmatpush1.xpose.msra.mxu0 0.0
    %301 = vmatprep.subr.mxu0 0.0
    %302 = vmatpush1.xpose.msra.mxu0 0.0
    %303 = vmatprep.subr.mxu0 0.0
    %304 = vmatpush1.xpose.msra.mxu0 0.0
    %305 = vmatprep.subr.mxu0 0.0
    %306 = vmatpush1.xpose.msra.mxu0 0.0
    %307 = vmatprep.subr.mxu0 0.0
    %308 = vmatpush1.xpose.msra.mxu0 0.0
    %309 = vmatprep.subr.mxu0 0.0
    %310 = vmatpush1.xpose.msra.mxu0 0.0
    %311 = vmatprep.subr.mxu0 0.0
    %312 = vmatpush1.xpose.msra.mxu0 0.0
    %313 = vmatprep.subr.mxu0 0.0
    %314 = vmatpush1.xpose.msra.mxu0 0.0
    %315 = vmatprep.subr.mxu0 0.0
    %316 = vmatpush1.xpose.msra.mxu0 0.0
    %317 = vmatprep.subr.mxu0 0.0
    %318 = vmatpush1.xpose.msra.mxu0 0.0
    %319 = vmatprep.subr.mxu0 0.0
    %320 = vmatpush1.xpose.msra.mxu0 0.0
    %321 = vmatprep.subr.mxu0 0.0
    %322 = vmatpush1.xpose.msra.mxu0 0.0
    %323 = vmatprep.subr.mxu0 0.0
    %324 = vmatpush1.xpose.msra.mxu0 0.0
    %325 = vmatprep.subr.mxu0 0.0
    %326 = vmatpush1.xpose.msra.mxu0 0.0
    %327 = vmatprep.subr.mxu0 0.0
    %328 = vmatpush1.xpose.msra.mxu0 0.0
    %329 = vmatprep.subr.mxu0 0.0
    %330 = vmatpush1.xpose.msra.mxu0 0.0
    %331 = vmatprep.subr.mxu0 0.0
    %332 = vmatpush1.xpose.msra.mxu0 0.0
    %333 = vmatprep.subr.mxu0 0.0
    %334 = vmatpush1.xpose.msra.mxu0 0.0
    %335 = vmatprep.mubr.f32.mxu0 0.0
    %336 = vmatmul.mubr.f32.gmra.mrb[0].mxu0 %v267
    %v337 = vpop.f32.mrb[0].mxu0
    %v338 = vadd.f32 0.0, %v337
    %v339 = vpop.f32.mrb[0].mxu0
    %340 = vdwg.mxu0
    %v341 = vsel %vm189, %v261, -inf
    %342 = vmax.xlane.f32.xlu0 %v341
    %v343 = vpop.xlane.xlu0 %342
    %v344 = vsel %vm189, %v338, -inf
    %345 = vmax.xlane.f32.xlu0 %v344
    %v346 = vpop.xlane.xlu0 %345
    %v347 = vsub.f32 %v261, %v343
    %v348 = vsub.f32 %v338, %v346
    %v349 = vmul.f32 %v347, 1.442695
    %v350 = vpow.pop %v349
    %v351 = vmul.f32 %v348, 1.442695
    %v352 = vpow.pop %v351
    %v353 = vsel %vm189, %v350, 0.0
    %354 = vadd.xlane.f32.xlu0 %v353
    %v355 = vpop.xlane.xlu0 %354
    %v356 = vsel %vm189, %v352, 0.0
    %357 = vadd.xlane.f32.xlu0 %v356
    %v358 = vpop.xlane.xlu0 %357
    %v359 = vrcp.pop %v355
    %v360 = vmul.f32 %v350, %v359
    %v361 = vrcp.pop %v358
    %v362 = vmul.f32 %v352, %v361
    %363 = vrot.lane.b32.xlu0 %v178, 96
    %v364 = vpop.permute.xlu0 %363
    %v367 = vsel %vm189, %v360, 0
    %369 = vmatprep.subr.mxu0 0.0
    %370 = vmatpush1.msra.mxu0 %v364
    %371 = vmatprep.subr.mxu0 0.0
    %372 = vmatpush1.msra.mxu0 0.0
    %373 = vmatprep.subr.mxu0 0.0
    %374 = vmatpush1.msra.mxu0 0.0
    %375 = vmatprep.subr.mxu0 0.0
    %376 = vmatpush1.msra.mxu0 0.0
    %377 = vmatprep.subr.mxu0 0.0
    %378 = vmatpush1.msra.mxu0 0.0
    %379 = vmatprep.subr.mxu0 0.0
    %380 = vmatpush1.msra.mxu0 0.0
    %381 = vmatprep.subr.mxu0 0.0
    %382 = vmatpush1.msra.mxu0 0.0
    %383 = vmatprep.subr.mxu0 0.0
    %384 = vmatpush1.msra.mxu0 0.0
    %385 = vmatprep.subr.mxu0 0.0
    %386 = vmatpush1.msra.mxu0 0.0
    %387 = vmatprep.subr.mxu0 0.0
    %388 = vmatpush1.msra.mxu0 0.0
    %389 = vmatprep.subr.mxu0 0.0
    %390 = vmatpush1.msra.mxu0 0.0
    %391 = vmatprep.subr.mxu0 0.0
    %392 = vmatpush1.msra.mxu0 0.0
    %393 = vmatprep.subr.mxu0 0.0
    %394 = vmatpush1.msra.mxu0 0.0
    %395 = vmatprep.subr.mxu0 0.0
    %396 = vmatpush1.msra.mxu0 0.0
    %397 = vmatprep.subr.mxu0 0.0
    %398 = vmatpush1.msra.mxu0 0.0
    %399 = vmatprep.subr.mxu0 0.0
    %400 = vmatpush1.msra.mxu0 0.0
    %401 = vmatprep.subr.mxu0 0.0
    %402 = vmatpush1.msra.mxu0 0.0
    %403 = vmatprep.subr.mxu0 0.0
    %404 = vmatpush1.msra.mxu0 0.0
    %405 = vmatprep.subr.mxu0 0.0
    %406 = vmatpush1.msra.mxu0 0.0
    %407 = vmatprep.subr.mxu0 0.0
    %408 = vmatpush1.msra.mxu0 0.0
    %409 = vmatprep.subr.mxu0 0.0
    %410 = vmatpush1.msra.mxu0 0.0
    %411 = vmatprep.subr.mxu0 0.0
    %412 = vmatpush1.msra.mxu0 0.0
    %413 = vmatprep.subr.mxu0 0.0
    %414 = vmatpush1.msra.mxu0 0.0
    %415 = vmatprep.subr.mxu0 0.0
    %416 = vmatpush1.msra.mxu0 0.0
    %417 = vmatprep.subr.mxu0 0.0
    %418 = vmatpush1.msra.mxu0 0.0
    %419 = vmatprep.subr.mxu0 0.0
    %420 = vmatpush1.msra.mxu0 0.0
    %421 = vmatprep.subr.mxu0 0.0
    %422 = vmatpush1.msra.mxu0 0.0
    %423 = vmatprep.subr.mxu0 0.0
    %424 = vmatpush1.msra.mxu0 0.0
    %425 = vmatprep.subr.mxu0 0.0
    %426 = vmatpush1.msra.mxu0 0.0
    %427 = vmatprep.subr.mxu0 0.0
    %428 = vmatpush1.msra.mxu0 0.0
    %429 = vmatprep.subr.mxu0 0.0
    %430 = vmatpush1.msra.mxu0 0.0
    %431 = vmatprep.subr.mxu0 0.0
    %432 = vmatpush1.msra.mxu0 0.0
    %433 = vmatprep.mubr.f32.mxu0 0.0
    %434 = vmatmul.mubr.f32.gmra.mrb[0].mxu0 %v367
    %v435 = vpop.f32.mrb[0].mxu0
    %v436 = vadd.f32 0.0, %v435
    %v437 = vpop.f32.mrb[0].mxu0
    %438 = vdwg.mxu0
    %439 = vrot.lane.b32.xlu0 %v183, 96
    %v440 = vpop.permute.xlu0 %439
    %v443 = vsel %vm189, %v362, 0
    %445 = vmatprep.subr.mxu0 0.0
    %446 = vmatpush1.msra.mxu0 %v440
    %447 = vmatprep.subr.mxu0 0.0
    %448 = vmatpush1.msra.mxu0 0.0
    %449 = vmatprep.subr.mxu0 0.0
    %450 = vmatpush1.msra.mxu0 0.0
    %451 = vmatprep.subr.mxu0 0.0
    %452 = vmatpush1.msra.mxu0 0.0
    %453 = vmatprep.subr.mxu0 0.0
    %454 = vmatpush1.msra.mxu0 0.0
    %455 = vmatprep.subr.mxu0 0.0
    %456 = vmatpush1.msra.mxu0 0.0
    %457 = vmatprep.subr.mxu0 0.0
    %458 = vmatpush1.msra.mxu0 0.0
    %459 = vmatprep.subr.mxu0 0.0
    %460 = vmatpush1.msra.mxu0 0.0
    %461 = vmatprep.subr.mxu0 0.0
    %462 = vmatpush1.msra.mxu0 0.0
    %463 = vmatprep.subr.mxu0 0.0
    %464 = vmatpush1.msra.mxu0 0.0
    %465 = vmatprep.subr.mxu0 0.0
    %466 = vmatpush1.msra.mxu0 0.0
    %467 = vmatprep.subr.mxu0 0.0
    %468 = vmatpush1.msra.mxu0 0.0
    %469 = vmatprep.subr.mxu0 0.0
    %470 = vmatpush1.msra.mxu0 0.0
    %471 = vmatprep.subr.mxu0 0.0
    %472 = vmatpush1.msra.mxu0 0.0
    %473 = vmatprep.subr.mxu0 0.0
    %474 = vmatpush1.msra.mxu0 0.0
    %475 = vmatprep.subr.mxu0 0.0
    %476 = vmatpush1.msra.mxu0 0.0
    %477 = vmatprep.subr.mxu0 0.0
    %478 = vmatpush1.msra.mxu0 0.0
    %479 = vmatprep.subr.mxu0 0.0
    %480 = vmatpush1.msra.mxu0 0.0
    %481 = vmatprep.subr.mxu0 0.0
    %482 = vmatpush1.msra.mxu0 0.0
    %483 = vmatprep.subr.mxu0 0.0
    %484 = vmatpush1.msra.mxu0 0.0
    %485 = vmatprep.subr.mxu0 0.0
    %486 = vmatpush1.msra.mxu0 0.0
    %487 = vmatprep.subr.mxu0 0.0
    %488 = vmatpush1.msra.mxu0 0.0
    %489 = vmatprep.subr.mxu0 0.0
    %490 = vmatpush1.msra.mxu0 0.0
    %491 = vmatprep.subr.mxu0 0.0
    %492 = vmatpush1.msra.mxu0 0.0
    %493 = vmatprep.subr.mxu0 0.0
    %494 = vmatpush1.msra.mxu0 0.0
    %495 = vmatprep.subr.mxu0 0.0
    %496 = vmatpush1.msra.mxu0 0.0
    %497 = vmatprep.subr.mxu0 0.0
    %498 = vmatpush1.msra.mxu0 0.0
    %499 = vmatprep.subr.mxu0 0.0
    %500 = vmatpush1.msra.mxu0 0.0
    %501 = vmatprep.subr.mxu0 0.0
    %502 = vmatpush1.msra.mxu0 0.0
    %503 = vmatprep.subr.mxu0 0.0
    %504 = vmatpush1.msra.mxu0 0.0
    %505 = vmatprep.subr.mxu0 0.0
    %506 = vmatpush1.msra.mxu0 0.0
    %507 = vmatprep.subr.mxu0 0.0
    %508 = vmatpush1.msra.mxu0 0.0
    %509 = vmatprep.mubr.f32.mxu0 0.0
    %510 = vmatmul.mubr.f32.gmra.mrb[0].mxu0 %v443
    %v511 = vpop.f32.mrb[0].mxu0
    %v512 = vadd.f32 0.0, %v511
    %v513 = vpop.f32.mrb[0].mxu0
    %514 = vdwg.mxu0
    %515 = vrot.lane.b32.xlu0 %v178, 120
    %v516 = vpop.permute.xlu0 %515
    %517 = vrot.lane.b32.xlu0 %v178, 104
    %v518 = vpop.permute.xlu0 %517
    %v519 = vsel %vm189, %v516, 0
    %v521 = vsel %vm189, %v518, 0
    %523 = vmatprep.subr.mxu0 0.0
    %524 = vmatpush1.xpose.msra.mxu0 %v521
    %525 = vmatprep.subr.mxu0 0.0
    %526 = vmatpush1.xpose.msra.mxu0 0.0
    %527 = vmatprep.subr.mxu0 0.0
    %528 = vmatpush1.xpose.msra.mxu0 0.0
    %529 = vmatprep.subr.mxu0 0.0
    %530 = vmatpush1.xpose.msra.mxu0 0.0
    %531 = vmatprep.subr.mxu0 0.0
    %532 = vmatpush1.xpose.msra.mxu0 0.0
    %533 = vmatprep.subr.mxu0 0.0
    %534 = vmatpush1.xpose.msra.mxu0 0.0
    %535 = vmatprep.subr.mxu0 0.0
    %536 = vmatpush1.xpose.msra.mxu0 0.0
    %537 = vmatprep.subr.mxu0 0.0
    %538 = vmatpush1.xpose.msra.mxu0 0.0
    %539 = vmatprep.subr.mxu0 0.0
    %540 = vmatpush1.xpose.msra.mxu0 0.0
    %541 = vmatprep.subr.mxu0 0.0
    %542 = vmatpush1.xpose.msra.mxu0 0.0
    %543 = vmatprep.subr.mxu0 0.0
    %544 = vmatpush1.xpose.msra.mxu0 0.0
    %545 = vmatprep.subr.mxu0 0.0
    %546 = vmatpush1.xpose.msra.mxu0 0.0
    %547 = vmatprep.subr.mxu0 0.0
    %548 = vmatpush1.xpose.msra.mxu0 0.0
    %549 = vmatprep.subr.mxu0 0.0
    %550 = vmatpush1.xpose.msra.mxu0 0.0
    %551 = vmatprep.subr.mxu0 0.0
    %552 = vmatpush1.xpose.msra.mxu0 0.0
    %553 = vmatprep.subr.mxu0 0.0
    %554 = vmatpush1.xpose.msra.mxu0 0.0
    %555 = vmatprep.subr.mxu0 0.0
    %556 = vmatpush1.xpose.msra.mxu0 0.0
    %557 = vmatprep.subr.mxu0 0.0
    %558 = vmatpush1.xpose.msra.mxu0 0.0
    %559 = vmatprep.subr.mxu0 0.0
    %560 = vmatpush1.xpose.msra.mxu0 0.0
    %561 = vmatprep.subr.mxu0 0.0
    %562 = vmatpush1.xpose.msra.mxu0 0.0
    %563 = vmatprep.subr.mxu0 0.0
    %564 = vmatpush1.xpose.msra.mxu0 0.0
    %565 = vmatprep.subr.mxu0 0.0
    %566 = vmatpush1.xpose.msra.mxu0 0.0
    %567 = vmatprep.subr.mxu0 0.0
    %568 = vmatpush1.xpose.msra.mxu0 0.0
    %569 = vmatprep.subr.mxu0 0.0
    %570 = vmatpush1.xpose.msra.mxu0 0.0
    %571 = vmatprep.subr.mxu0 0.0
    %572 = vmatpush1.xpose.msra.mxu0 0.0
    %573 = vmatprep.subr.mxu0 0.0
    %574 = vmatpush1.xpose.msra.mxu0 0.0
    %575 = vmatprep.subr.mxu0 0.0
    %576 = vmatpush1.xpose.msra.mxu0 0.0
    %577 = vmatprep.subr.mxu0 0.0
    %578 = vmatpush1.xpose.msra.mxu0 0.0
    %579 = vmatprep.subr.mxu0 0.0
    %580 = vmatpush1.xpose.msra.mxu0 0.0
    %581 = vmatprep.subr.mxu0 0.0
    %582 = vmatpush1.xpose.msra.mxu0 0.0
    %583 = vmatprep.subr.mxu0 0.0
    %584 = vmatpush1.xpose.msra.mxu0 0.0
    %585 = vmatprep.subr.mxu0 0.0
    %586 = vmatpush1.xpose.msra.mxu0 0.0
    %587 = vmatprep.mubr.f32.mxu0 0.0
    %588 = vmatmul.mubr.f32.gmra.mrb[0].mxu0 %v519
    %v589 = vpop.f32.mrb[0].mxu0
    %v590 = vadd.f32 0.0, %v589
    %v591 = vpop.f32.mrb[0].mxu0
    %592 = vdwg.mxu0
    %593 = vrot.lane.b32.xlu0 %v183, 120
    %v594 = vpop.permute.xlu0 %593
    %595 = vrot.lane.b32.xlu0 %v183, 104
    %v596 = vpop.permute.xlu0 %595
    %v597 = vsel %vm189, %v594, 0
    %v599 = vsel %vm189, %v596, 0
    %601 = vmatprep.subr.mxu0 0.0
    %602 = vmatpush1.xpose.msra.mxu0 %v599
    %603 = vmatprep.subr.mxu0 0.0
    %604 = vmatpush1.xpose.msra.mxu0 0.0
    %605 = vmatprep.subr.mxu0 0.0
    %606 = vmatpush1.xpose.msra.mxu0 0.0
    %607 = vmatprep.subr.mxu0 0.0
    %608 = vmatpush1.xpose.msra.mxu0 0.0
    %609 = vmatprep.subr.mxu0 0.0
    %610 = vmatpush1.xpose.msra.mxu0 0.0
    %611 = vmatprep.subr.mxu0 0.0
    %612 = vmatpush1.xpose.msra.mxu0 0.0
    %613 = vmatprep.subr.mxu0 0.0
    %614 = vmatpush1.xpose.msra.mxu0 0.0
    %615 = vmatprep.subr.mxu0 0.0
    %616 = vmatpush1.xpose.msra.mxu0 0.0
    %617 = vmatprep.subr.mxu0 0.0
    %618 = vmatpush1.xpose.msra.mxu0 0.0
    %619 = vmatprep.subr.mxu0 0.0
    %620 = vmatpush1.xpose.msra.mxu0 0.0
    %621 = vmatprep.subr.mxu0 0.0
    %622 = vmatpush1.xpose.msra.mxu0 0.0
    %623 = vmatprep.subr.mxu0 0.0
    %624 = vmatpush1.xpose.msra.mxu0 0.0
    %625 = vmatprep.subr.mxu0 0.0
    %626 = vmatpush1.xpose.msra.mxu0 0.0
    %627 = vmatprep.subr.mxu0 0.0
    %628 = vmatpush1.xpose.msra.mxu0 0.0
    %629 = vmatprep.subr.mxu0 0.0
    %630 = vmatpush1.xpose.msra.mxu0 0.0
    %631 = vmatprep.subr.mxu0 0.0
    %632 = vmatpush1.xpose.msra.mxu0 0.0
    %633 = vmatprep.subr.mxu0 0.0
    %634 = vmatpush1.xpose.msra.mxu0 0.0
    %635 = vmatprep.subr.mxu0 0.0
    %636 = vmatpush1.xpose.msra.mxu0 0.0
    %637 = vmatprep.subr.mxu0 0.0
    %638 = vmatpush1.xpose.msra.mxu0 0.0
    %639 = vmatprep.subr.mxu0 0.0
    %640 = vmatpush1.xpose.msra.mxu0 0.0
    %641 = vmatprep.subr.mxu0 0.0
    %642 = vmatpush1.xpose.msra.mxu0 0.0
    %643 = vmatprep.subr.mxu0 0.0
    %644 = vmatpush1.xpose.msra.mxu0 0.0
    %645 = vmatprep.subr.mxu0 0.0
    %646 = vmatpush1.xpose.msra.mxu0 0.0
    %647 = vmatprep.subr.mxu0 0.0
    %648 = vmatpush1.xpose.msra.mxu0 0.0
    %649 = vmatprep.subr.mxu0 0.0
    %650 = vmatpush1.xpose.msra.mxu0 0.0
    %651 = vmatprep.subr.mxu0 0.0
    %652 = vmatpush1.xpose.msra.mxu0 0.0
    %653 = vmatprep.subr.mxu0 0.0
    %654 = vmatpush1.xpose.msra.mxu0 0.0
    %655 = vmatprep.subr.mxu0 0.0
    %656 = vmatpush1.xpose.msra.mxu0 0.0
    %657 = vmatprep.subr.mxu0 0.0
    %658 = vmatpush1.xpose.msra.mxu0 0.0
    %659 = vmatprep.subr.mxu0 0.0
    %660 = vmatpush1.xpose.msra.mxu0 0.0
    %661 = vmatprep.subr.mxu0 0.0
    %662 = vmatpush1.xpose.msra.mxu0 0.0
    %663 = vmatprep.subr.mxu0 0.0
    %664 = vmatpush1.xpose.msra.mxu0 0.0
    %665 = vmatprep.mubr.f32.mxu0 0.0
    %666 = vmatmul.mubr.f32.gmra.mrb[0].mxu0 %v597
    %v667 = vpop.f32.mrb[0].mxu0
    %v668 = vadd.f32 0.0, %v667
    %v669 = vpop.f32.mrb[0].mxu0
    %670 = vdwg.mxu0
    %v671 = vsel %vm189, %v590, -inf
    %672 = vmax.xlane.f32.xlu0 %v671
    %v673 = vpop.xlane.xlu0 %672
    %v674 = vsel %vm189, %v668, -inf
    %675 = vmax.xlane.f32.xlu0 %v674
    %v676 = vpop.xlane.xlu0 %675
    %v677 = vsub.f32 %v590, %v673
    %v678 = vsub.f32 %v668, %v676
    %v679 = vmul.f32 %v677, 1.442695
    %v680 = vpow.pop %v679
    %v681 = vmul.f32 %v678, 1.442695
    %v682 = vpow.pop %v681
    %v683 = vsel %vm189, %v680, 0.0
    %684 = vadd.xlane.f32.xlu0 %v683
    %v685 = vpop.xlane.xlu0 %684
    %v686 = vsel %vm189, %v682, 0.0
    %687 = vadd.xlane.f32.xlu0 %v686
    %v688 = vpop.xlane.xlu0 %687
    %v689 = vrcp.pop %v685
    %v690 = vmul.f32 %v680, %v689
    %v691 = vrcp.pop %v688
    %v692 = vmul.f32 %v682, %v691
    %693 = vrot.lane.b32.xlu0 %v178, 88
    %v694 = vpop.permute.xlu0 %693
    %v697 = vsel %vm189, %v690, 0
    %699 = vmatprep.subr.mxu0 0.0
    %700 = vmatpush1.msra.mxu0 %v694
    %701 = vmatprep.subr.mxu0 0.0
    %702 = vmatpush1.msra.mxu0 0.0
    %703 = vmatprep.subr.mxu0 0.0
    %704 = vmatpush1.msra.mxu0 0.0
    %705 = vmatprep.subr.mxu0 0.0
    %706 = vmatpush1.msra.mxu0 0.0
    %707 = vmatprep.subr.mxu0 0.0
    %708 = vmatpush1.msra.mxu0 0.0
    %709 = vmatprep.subr.mxu0 0.0
    %710 = vmatpush1.msra.mxu0 0.0
    %711 = vmatprep.subr.mxu0 0.0
    %712 = vmatpush1.msra.mxu0 0.0
    %713 = vmatprep.subr.mxu0 0.0
    %714 = vmatpush1.msra.mxu0 0.0
    %715 = vmatprep.subr.mxu0 0.0
    %716 = vmatpush1.msra.mxu0 0.0
    %717 = vmatprep.subr.mxu0 0.0
    %718 = vmatpush1.msra.mxu0 0.0
    %719 = vmatprep.subr.mxu0 0.0
    %720 = vmatpush1.msra.mxu0 0.0
    %721 = vmatprep.subr.mxu0 0.0
    %722 = vmatpush1.msra.mxu0 0.0
    %723 = vmatprep.subr.mxu0 0.0
    %724 = vmatpush1.msra.mxu0 0.0
    %725 = vmatprep.subr.mxu0 0.0
    %726 = vmatpush1.msra.mxu0 0.0
    %727 = vmatprep.subr.mxu0 0.0
    %728 = vmatpush1.msra.mxu0 0.0
    %729 = vmatprep.subr.mxu0 0.0
    %730 = vmatpush1.msra.mxu0 0.0
    %731 = vmatprep.subr.mxu0 0.0
    %732 = vmatpush1.msra.mxu0 0.0
    %733 = vmatprep.subr.mxu0 0.0
    %734 = vmatpush1.msra.mxu0 0.0
    %735 = vmatprep.subr.mxu0 0.0
    %736 = vmatpush1.msra.mxu0 0.0
    %737 = vmatprep.subr.mxu0 0.0
    %738 = vmatpush1.msra.mxu0 0.0
    %739 = vmatprep.subr.mxu0 0.0
    %740 = vmatpush1.msra.mxu0 0.0
    %741 = vmatprep.subr.mxu0 0.0
    %742 = vmatpush1.msra.mxu0 0.0
    %743 = vmatprep.subr.mxu0 0.0
    %744 = vmatpush1.msra.mxu0 0.0
    %745 = vmatprep.subr.mxu0 0.0
    %746 = vmatpush1.msra.mxu0 0.0
    %747 = vmatprep.subr.mxu0 0.0
    %748 = vmatpush1.msra.mxu0 0.0
    %749 = vmatprep.subr.mxu0 0.0
    %750 = vmatpush1.msra.mxu0 0.0
    %751 = vmatprep.subr.mxu0 0.0
    %752 = vmatpush1.msra.mxu0 0.0
    %753 = vmatprep.subr.mxu0 0.0
    %754 = vmatpush1.msra.mxu0 0.0
    %755 = vmatprep.subr.mxu0 0.0
    %756 = vmatpush1.msra.mxu0 0.0
    %757 = vmatprep.subr.mxu0 0.0
    %758 = vmatpush1.msra.mxu0 0.0
    %759 = vmatprep.subr.mxu0 0.0
    %760 = vmatpush1.msra.mxu0 0.0
    %761 = vmatprep.subr.mxu0 0.0
    %762 = vmatpush1.msra.mxu0 0.0
    %763 = vmatprep.mubr.f32.mxu0 0.0
    %764 = vmatmul.mubr.f32.gmra.mrb[0].mxu0 %v697
    %v765 = vpop.f32.mrb[0].mxu0
    %v766 = vadd.f32 0.0, %v765
    %v767 = vpop.f32.mrb[0].mxu0
    %768 = vdwg.mxu0
    %769 = vrot.lane.b32.xlu0 %v183, 88
    %v770 = vpop.permute.xlu0 %769
    %v773 = vsel %vm189, %v692, 0
    %775 = vmatprep.subr.mxu0 0.0
    %776 = vmatpush1.msra.mxu0 %v770
    %777 = vmatprep.subr.mxu0 0.0
    %778 = vmatpush1.msra.mxu0 0.0
    %779 = vmatprep.subr.mxu0 0.0
    %780 = vmatpush1.msra.mxu0 0.0
    %781 = vmatprep.subr.mxu0 0.0
    %782 = vmatpush1.msra.mxu0 0.0
    %783 = vmatprep.subr.mxu0 0.0
    %784 = vmatpush1.msra.mxu0 0.0
    %785 = vmatprep.subr.mxu0 0.0
    %786 = vmatpush1.msra.mxu0 0.0
    %787 = vmatprep.subr.mxu0 0.0
    %788 = vmatpush1.msra.mxu0 0.0
    %789 = vmatprep.subr.mxu0 0.0
    %790 = vmatpush1.msra.mxu0 0.0
    %791 = vmatprep.subr.mxu0 0.0
    %792 = vmatpush1.msra.mxu0 0.0
    %793 = vmatprep.subr.mxu0 0.0
    %794 = vmatpush1.msra.mxu0 0.0
    %795 = vmatprep.subr.mxu0 0.0
    %796 = vmatpush1.msra.mxu0 0.0
    %797 = vmatprep.subr.mxu0 0.0
    %798 = vmatpush1.msra.mxu0 0.0
    %799 = vmatprep.subr.mxu0 0.0
    %800 = vmatpush1.msra.mxu0 0.0
    %801 = vmatprep.subr.mxu0 0.0
    %802 = vmatpush1.msra.mxu0 0.0
    %803 = vmatprep.subr.mxu0 0.0
    %804 = vmatpush1.msra.mxu0 0.0
    %805 = vmatprep.subr.mxu0 0.0
    %806 = vmatpush1.msra.mxu0 0.0
    %807 = vmatprep.subr.mxu0 0.0
    %808 = vmatpush1.msra.mxu0 0.0
    %809 = vmatprep.subr.mxu0 0.0
    %810 = vmatpush1.msra.mxu0 0.0
    %811 = vmatprep.subr.mxu0 0.0
    %812 = vmatpush1.msra.mxu0 0.0
    %813 = vmatprep.subr.mxu0 0.0
    %814 = vmatpush1.msra.mxu0 0.0
    %815 = vmatprep.subr.mxu0 0.0
    %816 = vmatpush1.msra.mxu0 0.0
    %817 = vmatprep.subr.mxu0 0.0
    %818 = vmatpush1.msra.mxu0 0.0
    %819 = vmatprep.subr.mxu0 0.0
    %820 = vmatpush1.msra.mxu0 0.0
    %821 = vmatprep.subr.mxu0 0.0
    %822 = vmatpush1.msra.mxu0 0.0
    %823 = vmatprep.subr.mxu0 0.0
    %824 = vmatpush1.msra.mxu0 0.0
    %825 = vmatprep.subr.mxu0 0.0
    %826 = vmatpush1.msra.mxu0 0.0
    %827 = vmatprep.subr.mxu0 0.0
    %828 = vmatpush1.msra.mxu0 0.0
    %829 = vmatprep.subr.mxu0 0.0
    %830 = vmatpush1.msra.mxu0 0.0
    %831 = vmatprep.subr.mxu0 0.0
    %832 = vmatpush1.msra.mxu0 0.0
    %833 = vmatprep.subr.mxu0 0.0
    %834 = vmatpush1.msra.mxu0 0.0
    %835 = vmatprep.subr.mxu0 0.0
    %836 = vmatpush1.msra.mxu0 0.0
    %837 = vmatprep.subr.mxu0 0.0
    %838 = vmatpush1.msra.mxu0 0.0
    %839 = vmatprep.mubr.f32.mxu0 0.0
    %840 = vmatmul.mubr.f32.gmra.mrb[0].mxu0 %v773
    %v841 = vpop.f32.mrb[0].mxu0
    %v842 = vadd.f32 0.0, %v841
    %v843 = vpop.f32.mrb[0].mxu0
    %844 = vdwg.mxu0
    %847 = vrot.lane.b32.xlu0 %v766, 8
    %v848 = vpop.permute.xlu0 %847
    %849 = vrot.lane.b32.xlu0 %v842, 8
    %v850 = vpop.permute.xlu0 %849
    %v853 = vsel %vm189, %v436, %v848
    %v854 = vsel %vm189, %v512, %v850
    %vm855 = vcmask 130048
    %v857 = vsel %vm855, %v853, 0
    %v860 = vsel %vm855, %v854, 0
    %862 = vmatprep.subr.mxu0 0.0
    %863 = vmatpush1.msra.mxu0 %v47
    %864 = vmatprep.subr.mxu0 0.0
    %865 = vmatpush1.msra.mxu0 %v48
    %866 = vmatprep.subr.mxu0 0.0
    %867 = vmatpush1.msra.mxu0 0.0
    %868 = vmatprep.subr.mxu0 0.0
    %869 = vmatpush1.msra.mxu0 0.0
    %870 = vmatprep.subr.mxu0 0.0
    %871 = vmatpush1.msra.mxu0 0.0
    %872 = vmatprep.subr.mxu0 0.0
    %873 = vmatpush1.msra.mxu0 0.0
    %874 = vmatprep.subr.mxu0 0.0
    %875 = vmatpush1.msra.mxu0 0.0
    %876 = vmatprep.subr.mxu0 0.0
    %877 = vmatpush1.msra.mxu0 0.0
    %878 = vmatprep.subr.mxu0 0.0
    %879 = vmatpush1.msra.mxu0 0.0
    %880 = vmatprep.subr.mxu0 0.0
    %881 = vmatpush1.msra.mxu0 0.0
    %882 = vmatprep.subr.mxu0 0.0
    %883 = vmatpush1.msra.mxu0 0.0
    %884 = vmatprep.subr.mxu0 0.0
    %885 = vmatpush1.msra.mxu0 0.0
    %886 = vmatprep.subr.mxu0 0.0
    %887 = vmatpush1.msra.mxu0 0.0
    %888 = vmatprep.subr.mxu0 0.0
    %889 = vmatpush1.msra.mxu0 0.0
    %890 = vmatprep.subr.mxu0 0.0
    %891 = vmatpush1.msra.mxu0 0.0
    %892 = vmatprep.subr.mxu0 0.0
    %893 = vmatpush1.msra.mxu0 0.0
    %894 = vmatprep.subr.mxu0 0.0
    %895 = vmatpush1.msra.mxu0 0.0
    %896 = vmatprep.subr.mxu0 0.0
    %897 = vmatpush1.msra.mxu0 0.0
    %898 = vmatprep.subr.mxu0 0.0
    %899 = vmatpush1.msra.mxu0 0.0
    %900 = vmatprep.subr.mxu0 0.0
    %901 = vmatpush1.msra.mxu0 0.0
    %902 = vmatprep.subr.mxu0 0.0
    %903 = vmatpush1.msra.mxu0 0.0
    %904 = vmatprep.subr.mxu0 0.0
    %905 = vmatpush1.msra.mxu0 0.0
    %906 = vmatprep.subr.mxu0 0.0
    %907 = vmatpush1.msra.mxu0 0.0
    %908 = vmatprep.subr.mxu0 0.0
    %909 = vmatpush1.msra.mxu0 0.0
    %910 = vmatprep.subr.mxu0 0.0
    %911 = vmatpush1.msra.mxu0 0.0
    %912 = vmatprep.subr.mxu0 0.0
    %913 = vmatpush1.msra.mxu0 0.0
    %914 = vmatprep.subr.mxu0 0.0
    %915 = vmatpush1.msra.mxu0 0.0
    %916 = vmatprep.subr.mxu0 0.0
    %917 = vmatpush1.msra.mxu0 0.0
    %918 = vmatprep.subr.mxu0 0.0
    %919 = vmatpush1.msra.mxu0 0.0
    %920 = vmatprep.subr.mxu0 0.0
    %921 = vmatpush1.msra.mxu0 0.0
    %922 = vmatprep.subr.mxu0 0.0
    %923 = vmatpush1.msra.mxu0 0.0
    %924 = vmatprep.subr.mxu0 0.0
    %925 = vmatpush1.msra.mxu0 0.0
    %926 = vmatprep.mubr.f32.mxu0 0.0
    %927 = vmatmul.mubr.f32.gmra.mrb[0].mxu0 %v857
    %v928 = vpop.f32.mrb[0].mxu0
    %v929 = vadd.f32 0.0, %v928
    %v930 = vpop.f32.mrb[0].mxu0
    %931 = vmatprep.mubr.f32.mxu0 0.0
    %932 = vmatmul.mubr.f32.gmra.mrb[0].mxu0 %v860
    %v933 = vpop.f32.mrb[0].mxu0
    %v934 = vadd.f32 0.0, %v933
    %v935 = vpop.f32.mrb[0].mxu0
    %936 = vdwg.mxu0
    %v937 = vadd.f32 %v40, %v929
    %v938 = vadd.f32 %v41, %v934
    %v939 = vlaneseq
    %v940 = vshrl.u32 %v939, 7
    %v941 = vsub.s32 4, %v940
    %v942 = vrot.slane %v42, %v941
    %v943 = vadd.f32 %v937, %v942
    %v944 = vadd.f32 %v938, %v942
    %v945 = vsel %vm61, %v943, 0.0
    %946 = vadd.xlane.f32.xlu0 %v945
    %v947 = vpop.xlane.xlu0 %946
    %v948 = vsel %vm61, %v944, 0.0
    %949 = vadd.xlane.f32.xlu0 %v948
    %v950 = vpop.xlane.xlu0 %949
    %v951 = vmul.f32 %v947, %v68
    %v952 = vmul.f32 %v950, %v68
    %v953 = vsub.f32 %v943, %v951
    %v954 = vsub.f32 %v944, %v952
    %v955 = vmul.f32 %v953, %v953
    %v956 = vmul.f32 %v954, %v954
    %v957 = vsel %vm61, %v955, 0.0
    %958 = vadd.xlane.f32.xlu0 %v957
    %v959 = vpop.xlane.xlu0 %958
    %v960 = vsel %vm61, %v956, 0.0
    %961 = vadd.xlane.f32.xlu0 %v960
    %v962 = vpop.xlane.xlu0 %961
    %v963 = vmul.f32 %v959, %v68
    %v964 = vmul.f32 %v962, %v68
    %v965 = vadd.f32 %v963, 1e-05
    %v966 = vadd.f32 %v964, 1e-05
    %v967 = vrsqrt.pop %v965
    %v968 = vrsqrt.pop %v966
    %v969 = vmul.f32 %v953, %v967
    %v970 = vmul.f32 %v954, %v968
    %v971 = vlaneseq
    %v972 = vshrl.u32 %v971, 7
    %v973 = vsub.s32 2, %v972
    %v974 = vrot.slane %v42, %v973
    %v975 = vmul.f32 %v969, %v974
    %v976 = vmul.f32 %v970, %v974
    %v977 = vlaneseq
    %v978 = vshrl.u32 %v977, 7
    %v979 = vsub.s32 3, %v978
    %v980 = vrot.slane %v42, %v979
    %v981 = vadd.f32 %v975, %v980
    %v982 = vadd.f32 %v976, %v980
    %v983 = vlaneseq
    %v984 = vshrl.u32 %v983, 7
    %v985 = vsub.s32 5, %v984
    %v986 = vrot.slane %v42, %v985
    %v988 = vsel %vm61, %v981, 0
    %v991 = vsel %vm61, %v982, 0
    %993 = vmatprep.subr.mxu0 0.0
    %994 = vmatpush1.msra.mxu0 %v49
    %995 = vmatprep.subr.mxu0 0.0
    %996 = vmatpush1.msra.mxu0 %v50
    %997 = vmatprep.subr.mxu0 0.0
    %998 = vmatpush1.msra.mxu0 %v51
    %999 = vmatprep.subr.mxu0 0.0
    %1000 = vmatpush1.msra.mxu0 %v52
    %1001 = vmatprep.subr.mxu0 0.0
    %1002 = vmatpush1.msra.mxu0 0.0
    %1003 = vmatprep.subr.mxu0 0.0
    %1004 = vmatpush1.msra.mxu0 0.0
    %1005 = vmatprep.subr.mxu0 0.0
    %1006 = vmatpush1.msra.mxu0 0.0
    %1007 = vmatprep.subr.mxu0 0.0
    %1008 = vmatpush1.msra.mxu0 0.0
    %1009 = vmatprep.subr.mxu0 0.0
    %1010 = vmatpush1.msra.mxu0 0.0
    %1011 = vmatprep.subr.mxu0 0.0
    %1012 = vmatpush1.msra.mxu0 0.0
    %1013 = vmatprep.subr.mxu0 0.0
    %1014 = vmatpush1.msra.mxu0 0.0
    %1015 = vmatprep.subr.mxu0 0.0
    %1016 = vmatpush1.msra.mxu0 0.0
    %1017 = vmatprep.subr.mxu0 0.0
    %1018 = vmatpush1.msra.mxu0 0.0
    %1019 = vmatprep.subr.mxu0 0.0
    %1020 = vmatpush1.msra.mxu0 0.0
    %1021 = vmatprep.subr.mxu0 0.0
    %1022 = vmatpush1.msra.mxu0 0.0
    %1023 = vmatprep.subr.mxu0 0.0
    %1024 = vmatpush1.msra.mxu0 0.0
    %1025 = vmatprep.subr.mxu0 0.0
    %1026 = vmatpush1.msra.mxu0 0.0
    %1027 = vmatprep.subr.mxu0 0.0
    %1028 = vmatpush1.msra.mxu0 0.0
    %1029 = vmatprep.subr.mxu0 0.0
    %1030 = vmatpush1.msra.mxu0 0.0
    %1031 = vmatprep.subr.mxu0 0.0
    %1032 = vmatpush1.msra.mxu0 0.0
    %1033 = vmatprep.subr.mxu0 0.0
    %1034 = vmatpush1.msra.mxu0 0.0
    %1035 = vmatprep.subr.mxu0 0.0
    %1036 = vmatpush1.msra.mxu0 0.0
    %1037 = vmatprep.subr.mxu0 0.0
    %1038 = vmatpush1.msra.mxu0 0.0
    %1039 = vmatprep.subr.mxu0 0.0
    %1040 = vmatpush1.msra.mxu0 0.0
    %1041 = vmatprep.subr.mxu0 0.0
    %1042 = vmatpush1.msra.mxu0 0.0
    %1043 = vmatprep.subr.mxu0 0.0
    %1044 = vmatpush1.msra.mxu0 0.0
    %1045 = vmatprep.subr.mxu0 0.0
    %1046 = vmatpush1.msra.mxu0 0.0
    %1047 = vmatprep.subr.mxu0 0.0
    %1048 = vmatpush1.msra.mxu0 0.0
    %1049 = vmatprep.subr.mxu0 0.0
    %1050 = vmatpush1.msra.mxu0 0.0
    %1051 = vmatprep.subr.mxu0 0.0
    %1052 = vmatpush1.msra.mxu0 0.0
    %1053 = vmatprep.subr.mxu0 0.0
    %1054 = vmatpush1.msra.mxu0 0.0
    %1055 = vmatprep.subr.mxu0 0.0
    %1056 = vmatpush1.msra.mxu0 0.0
    %1057 = vmatprep.mubr.f32.mxu0 0.0
    %1058 = vmatmul.mubr.f32.gmra.mrb[0].mxu0 %v988
    %v1059 = vpop.f32.mrb[0].mxu0
    %v1060 = vadd.f32 %v986, %v1059
    %v1061 = vpop.f32.mrb[0].mxu0
    %1062 = vmatprep.mubr.f32.mxu0 0.0
    %1063 = vmatmul.mubr.f32.gmra.mrb[0].mxu0 %v991
    %v1064 = vpop.f32.mrb[0].mxu0
    %v1065 = vadd.f32 %v986, %v1064
    %v1066 = vpop.f32.mrb[0].mxu0
    %1067 = vdwg.mxu0
    %v1068 = vmul.f32 %v1060, 0.5
    %v1069 = vmul.f32 %v1065, 0.5
    %v1070 = vmul.f32 %v1060, 0.70710677
    %v1071 = vmul.f32 %v1065, 0.70710677
    %v1072 = verf.f32.pop %v1070
    %v1073 = verf.f32.pop %v1071
    %v1074 = vadd.f32 %v1072, 1.0
    %v1075 = vadd.f32 %v1073, 1.0
    %v1076 = vmul.f32 %v1068, %v1074
    %v1077 = vmul.f32 %v1069, %v1075
    %v1078 = vlaneseq
    %v1079 = vshrl.u32 %v1078, 7
    %v1080 = vsub.s32 6, %v1079
    %v1081 = vrot.slane %v42, %v1080
    %vm1082 = vcmask 523264
    %v1084 = vsel %vm1082, %v1076, 0
    %v1087 = vsel %vm1082, %v1077, 0
    %1089 = vmatprep.subr.mxu0 0.0
    %1090 = vmatpush1.msra.mxu0 %v53
    %1091 = vmatprep.subr.mxu0 0.0
    %1092 = vmatpush1.msra.mxu0 %v54
    %1093 = vmatprep.subr.mxu0 0.0
    %1094 = vmatpush1.msra.mxu0 %v55
    %1095 = vmatprep.subr.mxu0 0.0
    %1096 = vmatpush1.msra.mxu0 %v56
    %1097 = vmatprep.subr.mxu0 0.0
    %1098 = vmatpush1.msra.mxu0 %v57
    %1099 = vmatprep.subr.mxu0 0.0
    %1100 = vmatpush1.msra.mxu0 %v58
    %1101 = vmatprep.subr.mxu0 0.0
    %1102 = vmatpush1.msra.mxu0 %v59
    %1103 = vmatprep.subr.mxu0 0.0
    %1104 = vmatpush1.msra.mxu0 %v60
    %1105 = vmatprep.subr.mxu0 0.0
    %1106 = vmatpush1.msra.mxu0 0.0
    %1107 = vmatprep.subr.mxu0 0.0
    %1108 = vmatpush1.msra.mxu0 0.0
    %1109 = vmatprep.subr.mxu0 0.0
    %1110 = vmatpush1.msra.mxu0 0.0
    %1111 = vmatprep.subr.mxu0 0.0
    %1112 = vmatpush1.msra.mxu0 0.0
    %1113 = vmatprep.subr.mxu0 0.0
    %1114 = vmatpush1.msra.mxu0 0.0
    %1115 = vmatprep.subr.mxu0 0.0
    %1116 = vmatpush1.msra.mxu0 0.0
    %1117 = vmatprep.subr.mxu0 0.0
    %1118 = vmatpush1.msra.mxu0 0.0
    %1119 = vmatprep.subr.mxu0 0.0
    %1120 = vmatpush1.msra.mxu0 0.0
    %1121 = vmatprep.subr.mxu0 0.0
    %1122 = vmatpush1.msra.mxu0 0.0
    %1123 = vmatprep.subr.mxu0 0.0
    %1124 = vmatpush1.msra.mxu0 0.0
    %1125 = vmatprep.subr.mxu0 0.0
    %1126 = vmatpush1.msra.mxu0 0.0
    %1127 = vmatprep.subr.mxu0 0.0
    %1128 = vmatpush1.msra.mxu0 0.0
    %1129 = vmatprep.subr.mxu0 0.0
    %1130 = vmatpush1.msra.mxu0 0.0
    %1131 = vmatprep.subr.mxu0 0.0
    %1132 = vmatpush1.msra.mxu0 0.0
    %1133 = vmatprep.subr.mxu0 0.0
    %1134 = vmatpush1.msra.mxu0 0.0
    %1135 = vmatprep.subr.mxu0 0.0
    %1136 = vmatpush1.msra.mxu0 0.0
    %1137 = vmatprep.subr.mxu0 0.0
    %1138 = vmatpush1.msra.mxu0 0.0
    %1139 = vmatprep.subr.mxu0 0.0
    %1140 = vmatpush1.msra.mxu0 0.0
    %1141 = vmatprep.subr.mxu0 0.0
    %1142 = vmatpush1.msra.mxu0 0.0
    %1143 = vmatprep.subr.mxu0 0.0
    %1144 = vmatpush1.msra.mxu0 0.0
    %1145 = vmatprep.subr.mxu0 0.0
    %1146 = vmatpush1.msra.mxu0 0.0
    %1147 = vmatprep.subr.mxu0 0.0
    %1148 = vmatpush1.msra.mxu0 0.0
    %1149 = vmatprep.subr.mxu0 0.0
    %1150 = vmatpush1.msra.mxu0 0.0
    %1151 = vmatprep.subr.mxu0 0.0
    %1152 = vmatpush1.msra.mxu0 0.0
    %1153 = vmatprep.mubr.f32.mxu0 0.0
    %1154 = vmatmul.mubr.f32.gmra.mrb[0].mxu0 %v1084
    %v1155 = vpop.f32.mrb[0].mxu0
    %v1156 = vadd.f32 %v1081, %v1155
    %v1157 = vpop.f32.mrb[0].mxu0
    %1158 = vmatprep.mubr.f32.mxu0 0.0
    %1159 = vmatmul.mubr.f32.gmra.mrb[0].mxu0 %v1087
    %v1160 = vpop.f32.mrb[0].mxu0
    %v1161 = vadd.f32 %v1081, %v1160
    %v1162 = vpop.f32.mrb[0].mxu0
    %1163 = vdwg.mxu0
    %v1164 = vadd.f32 %v943, %v1156
    %v1165 = vadd.f32 %v944, %v1161
    %1166 = vst.msk [vmem:[#allocation7] sm:$0xff] %vm61, %v1164
    %1167 = vst.msk [vmem:[#allocation7 + $0x8] sm:$0xff] %vm61, %v1165
    // Predicated region
    $region18: #{tpu_custom_call.1} parent=1 // pred_check
      _
    $region19: #{tpu_custom_call.1} parent=1 // pred_check_branch
      %1169 = sbr.rel (0) target = $region21
    $region20: #{tpu_custom_call.1} parent=1 // pred_region
      %s1171 = ssub.s32 256, 256
      %1172 = vsyncadd [#allocation4], %s1171
      %s1173 = sshll.u32 [#allocation7], 4
      %s1174 = int_to_ptr.vmem [resolvable:$true] %s1173
      %1179 = dma.vmem_to_hbm [thread:$0]  %s1174, 256, %s2, [#allocation4], 128, 128, 8
    $region21: #{tpu_custom_call.1} parent=1 // pred_fallthru
      _
    // Predicated region
    $region22: #{tpu_custom_call.1} parent=1 // pred_check
      _
    $region23: #{tpu_custom_call.1} parent=1 // pred_check_branch
      %1181 = sbr.rel (0) target = $region25
    $region24: #{tpu_custom_call.1} parent=1 // pred_region
      %1182 = dma.done [#allocation4], 256
    $region25: #{tpu_custom_call.1} parent=1 // pred_fallthru
      _
    %1183 = vsyncpa [#allocation3], 1
    %1184 = vsyncpa [#allocation6], 1
    %1185 = vsyncpa [#allocation4], 1

</llo_original>
